<compile_context>
chip_gen: v6e
topology: v6e:2x2x1
jax: 0.10.0
libtpu: 0.0.40
codegen_flags: <defaults>
</compile_context>

<pallas_src>
import functools
import math

import numpy as np

import jax
import jax.numpy as jnp
from jax import lax
from jax.experimental import pallas as pl
from jax.experimental.pallas import tpu as pltpu


def _round_up(x, m):
    return ((x + m - 1) // m) * m


_ISSUE_UNROLL = 8


def _embeddings_kernel(*refs, eps, tile_n, gather_pos):
    """One grid step: gather TILE_N token (+pos) rows, add type emb, LayerNorm."""
    if gather_pos:
        (ids_smem, pos_smem, typ_ref, tok_hbm, pos_hbm,
         typ_tab_ref, gamma_ref, beta_ref,
         out_ref, tok_buf, pos_buf, sem) = refs
    else:
        (ids_smem, typ_ref, tok_hbm, pos_ref,
         typ_tab_ref, gamma_ref, beta_ref,
         out_ref, tok_buf, sem) = refs
        pos_smem = pos_hbm = pos_buf = None

    base = pl.program_id(0) * tile_n
    hidden = out_ref.shape[-1]

    # ---- 1. Issue all row-gather DMAs for this tile.  Partially unrolled so
    #         the scalar-ALU slots and vector-misc descriptor build co-issue.
    #         All ids_smem reads happen before any semaphore wait.
    unroll = _ISSUE_UNROLL if tile_n % _ISSUE_UNROLL == 0 else 1

    @pl.loop(0, tile_n // unroll)
    def _issue(g):
        for u in range(unroll):                      # static partial unroll
            r = g * unroll + u
            tok_row = ids_smem[base + r]
            pltpu.make_async_copy(tok_hbm.at[pl.ds(tok_row, 1)],
                                  tok_buf.at[pl.ds(r, 1)],
                                  sem.at[0]).start()
            if gather_pos:
                pos_row = pos_smem[base + r]
                pltpu.make_async_copy(pos_hbm.at[pl.ds(pos_row, 1)],
                                      pos_buf.at[pl.ds(r, 1)],
                                      sem.at[1]).start()

    # ---- 2. While the gathers are in flight, do the work that does not
    #         depend on them: token-type select (+ position slab, fast path).
    typ_ids = typ_ref[...]                                   # (TILE_N, 1) i32
    n_types = typ_tab_ref.shape[0]
    type_rows = [typ_tab_ref[t][None, :].astype(jnp.float32)
                 for t in range(n_types)]                    # hoisted rows
    typ = jnp.broadcast_to(type_rows[0], (tile_n, hidden))
    for t in range(1, n_types):                              # T=2 -> one select
        typ = jnp.where(typ_ids == t, type_rows[t], typ)

    if not gather_pos:
        pos = pos_ref[...].astype(jnp.float32)               # (pos_rows, H)
        reps = tile_n // pos.shape[0]
        if reps > 1:                                         # S divides TILE_N
            pos = jnp.tile(pos, (reps, 1))
        pre = pos + typ
    else:
        pre = typ

    # ---- 3. Aggregate waits.  DMA semaphores count bytes, and every copy on
    #         sem[k] above is exactly one H-row of the same dtype as the
    #         buffer, so one wait sized like the full (TILE_N, H) buffer
    #         consumes exactly the TILE_N row-copy completions.
    pltpu.make_async_copy(tok_buf, tok_buf, sem.at[0]).wait()
    x = tok_buf[...].astype(jnp.float32) + pre
    if gather_pos:
        pltpu.make_async_copy(pos_buf, pos_buf, sem.at[1]).wait()
        x = x + pos_buf[...].astype(jnp.float32)

    # ---- 4. LayerNorm over hidden axis (biased variance, like nn.LayerNorm).
    mean = jnp.mean(x, axis=-1, keepdims=True)
    centered = x - mean
    var = jnp.mean(centered * centered, axis=-1, keepdims=True)
    x_norm = centered * lax.rsqrt(var + eps)

    out_ref[...] = (x_norm * gamma_ref[...] + beta_ref[...]).astype(out_ref.dtype)


def _pick_tile_n(requested, S, gather_pos):
    """Pick a row-tile size: multiple of 8, and (fast path) divisor/multiple of S."""
    target = 512 if requested is None else max(8, int(requested))
    target = _round_up(target, 8)
    if gather_pos:
        return target
    if target >= S:
        # Tile spans whole sequences: multiple of lcm(S, 8).
        step = (S * 8) // math.gcd(S, 8)
        return max(step, (target // step) * step)
    # Tile stays inside one sequence: largest multiple-of-8 divisor of S.
    best = 0
    for d in range(8, target + 1, 8):
        if S % d == 0:
            best = d
    if best:
        return best
    return (S * 8) // math.gcd(S, 8)


def transformer_embeddings(input_ids, params, token_type_ids=None,
                           position_ids=None, eps=1e-12, tile_n=None,
                           out_dtype=None):
    """Pallas implementation of TransformerEmbeddings.forward (eval mode)."""
    B, S = input_ids.shape
    N = B * S

    tok_tab = params["token_emb"]          # native dtype, stays in HBM
    pos_tab = params["pos_emb"]            # native dtype
    typ_tab = params["type_emb"]
    H = tok_tab.shape[1]
    T = typ_tab.shape[0]
    if out_dtype is None:
        out_dtype = tok_tab.dtype

    gather_pos = position_ids is not None
    tile_n = _pick_tile_n(tile_n, S, gather_pos)
    n_pad = _round_up(N, tile_n)
    n_tiles = n_pad // tile_n

    ids = input_ids.reshape(N).astype(jnp.int32)
    typ = (jnp.zeros((N,), jnp.int32) if token_type_ids is None
           else token_type_ids.reshape(N).astype(jnp.int32))
    if n_pad != N:
        ids = jnp.pad(ids, (0, n_pad - N))       # row 0 is a valid gather target
        typ = jnp.pad(typ, (0, n_pad - N))
    typ2d = typ.reshape(n_pad, 1)

    gamma = params["ln_gamma"].reshape(1, H).astype(jnp.float32)
    beta = params["ln_beta"].reshape(1, H).astype(jnp.float32)

    kernel = functools.partial(_embeddings_kernel, eps=eps, tile_n=tile_n,
                               gather_pos=gather_pos)

    tok_isz = np.dtype(tok_tab.dtype).itemsize
    pos_isz = np.dtype(pos_tab.dtype).itemsize
    typ_isz = np.dtype(typ_tab.dtype).itemsize
    out_isz = np.dtype(jnp.dtype(out_dtype)).itemsize

    if gather_pos:
        pos_flat = position_ids.reshape(N).astype(jnp.int32)
        if n_pad != N:
            pos_flat = jnp.pad(pos_flat, (0, n_pad - N))
        num_prefetch = 2
        scalar_args = (ids, pos_flat)
        tensor_args = (typ2d, tok_tab, pos_tab, typ_tab, gamma, beta)
        in_specs = [
            pl.BlockSpec((tile_n, 1), lambda i, ids, pos: (i, 0)),   # type ids
            pl.BlockSpec(memory_space=pl.ANY),                       # token table
            pl.BlockSpec(memory_space=pl.ANY),                       # position table
            pl.BlockSpec((T, H), lambda i, ids, pos: (0, 0)),        # type table
            pl.BlockSpec((1, H), lambda i, ids, pos: (0, 0)),        # gamma
            pl.BlockSpec((1, H), lambda i, ids, pos: (0, 0)),        # beta
        ]
        out_spec = pl.BlockSpec((tile_n, H), lambda i, ids, pos: (i, 0))
        scratch = [pltpu.VMEM((tile_n, H), tok_tab.dtype),
                   pltpu.VMEM((tile_n, H), pos_tab.dtype),
                   pltpu.SemaphoreType.DMA((2,))]
        pos_vmem = tile_n * H * pos_isz                      # pos_buf scratch
    else:
        # Default arange positions: stream the (S, H) slab via the pipeline.
        pos_rows = min(tile_n, S)
        pos_blocks = S // pos_rows
        pos_sliced = pos_tab[:S]
        num_prefetch = 1
        scalar_args = (ids,)
        tensor_args = (typ2d, tok_tab, pos_sliced, typ_tab, gamma, beta)
        in_specs = [
            pl.BlockSpec((tile_n, 1), lambda i, ids: (i, 0)),         # type ids
            pl.BlockSpec(memory_space=pl.ANY),                        # token table
            pl.BlockSpec((pos_rows, H),
                         lambda i, ids: (i % pos_blocks, 0)),         # pos slab
            pl.BlockSpec((T, H), lambda i, ids: (0, 0)),              # type table
            pl.BlockSpec((1, H), lambda i, ids: (0, 0)),              # gamma
            pl.BlockSpec((1, H), lambda i, ids: (0, 0)),              # beta
        ]
        out_spec = pl.BlockSpec((tile_n, H), lambda i, ids: (i, 0))
        scratch = [pltpu.VMEM((tile_n, H), tok_tab.dtype),
                   pltpu.SemaphoreType.DMA((2,))]
        pos_vmem = 2 * pos_rows * H * pos_isz                # double-buffered slab

    # Explicit scoped-VMEM budget (v5e default is only 16 MiB).
    vmem_need = (tile_n * H * tok_isz            # token gather scratch
                 + pos_vmem
                 + 2 * tile_n * 4                # type-id blocks
                 + 2 * T * H * typ_isz           # type table blocks
                 + 4 * H * 4                     # gamma + beta blocks
                 + 2 * tile_n * H * out_isz)     # output blocks
    vmem_limit = int(min(max(2 * vmem_need + (4 << 20), 32 << 20), 64 << 20))

    bytes_accessed = (n_pad * H * (tok_isz + pos_isz)         # gathered/streamed rows
                      + n_pad * 4 * (1 + num_prefetch)        # type ids + prefetched ids
                      + n_pad * H * out_isz)                  # output store
    cost = pl.CostEstimate(flops=9 * n_pad * H,
                           transcendentals=n_pad,
                           bytes_accessed=int(bytes_accessed))

    out = pl.pallas_call(
        kernel,
        out_shape=jax.ShapeDtypeStruct((n_pad, H), out_dtype),
        grid_spec=pltpu.PrefetchScalarGridSpec(
            num_scalar_prefetch=num_prefetch,
            grid=(n_tiles,),
            in_specs=in_specs,
            out_specs=out_spec,
            scratch_shapes=scratch,
        ),
        compiler_params=pltpu.CompilerParams(
            dimension_semantics=("parallel",),
            vmem_limit_bytes=vmem_limit,
        ),
        cost_estimate=cost,
    )(*scalar_args, *tensor_args)

    # Dropout in eval mode is identity.
    return out[:N].reshape(B, S, H)


def _reference(input_ids, params, token_type_ids=None, position_ids=None,
               eps=1e-12):
    B, S = input_ids.shape
    if token_type_ids is None:
        token_type_ids = jnp.zeros((B, S), dtype=jnp.int32)
    if position_ids is None:
        position_ids = jnp.broadcast_to(jnp.arange(S)[None, :], (B, S))
    tok = params["token_emb"][input_ids]
    pos = params["pos_emb"][position_ids]
    typ = params["type_emb"][token_type_ids]
    x = tok + pos + typ
    mean = jnp.mean(x, axis=-1, keepdims=True)
    var = jnp.mean((x - mean) ** 2, axis=-1, keepdims=True)
    xn = (x - mean) / jnp.sqrt(var + eps)
    return xn * params["ln_gamma"] + params["ln_beta"]


if __name__ == "__main__":
    # Module config (small, deterministic).
    vocab_size = 100
    hidden_size = 32
    max_position_embeddings = 16
    type_vocab_size = 2
    B, S = 2, 8

    key = jax.random.PRNGKey(0)
    k_tok, k_pos, k_typ, k_ids, k_tt = jax.random.split(key, 5)

    params = {
        "token_emb": 0.02 * jax.random.normal(
            k_tok, (vocab_size, hidden_size), dtype=jnp.float32),
        "pos_emb": 0.02 * jax.random.normal(
            k_pos, (max_position_embeddings, hidden_size), dtype=jnp.float32),
        "type_emb": 0.02 * jax.random.normal(
            k_typ, (type_vocab_size, hidden_size), dtype=jnp.float32),
        "ln_gamma": jnp.ones((hidden_size,), dtype=jnp.float32),
        "ln_beta": jnp.zeros((hidden_size,), dtype=jnp.float32),
    }

    input_ids = jax.random.randint(k_ids, (B, S), 0, vocab_size,
                                   dtype=jnp.int32)
    token_type_ids = jax.random.randint(k_tt, (B, S), 0, type_vocab_size,
                                        dtype=jnp.int32)

    ref = _reference(input_ids, params, token_type_ids)

    # Fast path, TILE_N == S (N=16 -> 2 grid steps).
    out = jax.block_until_ready(transformer_embeddings(
        input_ids, params, token_type_ids=token_type_ids, tile_n=8))
    assert out.shape == (B, S, hidden_size)
    assert jnp.allclose(out, ref, atol=1e-4, rtol=1e-4), "fast path (tile=S) mismatch"

    # Fast path, TILE_N = 2*S (exercises the in-kernel position-slab tiling).
    out2 = jax.block_until_ready(transformer_embeddings(
        input_ids, params, token_type_ids=token_type_ids, tile_n=16))
    assert jnp.allclose(out2, ref, atol=1e-4, rtol=1e-4), "fast path (tile=2S) mismatch"

    # User-supplied position_ids (per-row DMA gather of the position table).
    position_ids = jnp.broadcast_to(
        jnp.arange(S, dtype=jnp.int32)[::-1][None, :], (B, S))
    ref_rev = _reference(input_ids, params, token_type_ids,
                         position_ids=position_ids)
    out3 = jax.block_until_ready(transformer_embeddings(
        input_ids, params, token_type_ids=token_type_ids,
        position_ids=position_ids, tile_n=8))
    assert jnp.allclose(out3, ref_rev, atol=1e-4, rtol=1e-4), \
        "gathered-position path mismatch"

    print("KERNEL_OK")
</pallas_src>

<mosaic_0001>
module attributes {stable_mosaic.version = 11 : i64} {
  func.func @_embeddings_kernel(%arg0: i32, %arg1: memref<16xi32, #tpu.memory_space<smem>>, %arg2: memref<8x1xi32, #tpu.memory_space<vmem>>, %arg3: memref<100x32xf32, #tpu.memory_space<any>>, %arg4: memref<8x32xf32, #tpu.memory_space<vmem>>, %arg5: memref<2x32xf32, #tpu.memory_space<vmem>>, %arg6: memref<1x32xf32, #tpu.memory_space<vmem>>, %arg7: memref<1x32xf32, #tpu.memory_space<vmem>>, %arg8: memref<8x32xf32, #tpu.memory_space<vmem>>, %arg9: memref<8x32xf32, #tpu.memory_space<vmem>>, %arg10: memref<2x!tpu.dma_semaphore, #tpu.memory_space<semaphore_mem>>) attributes {dimension_semantics = [#tpu.dimension_semantics<parallel>], iteration_bounds = array<i64: 2>, scalar_prefetch = 1 : i64, scratch_operands = 2 : i64, tpu.core_type = #tpu.core_type<tc>, window_params = [{transform_indices = @transform_0, window_bounds = array<i64: 8, 1>}, {}, {transform_indices = @transform_2, window_bounds = array<i64: 8, 32>}, {pipeline_mode = #tpu.pipeline_mode<synchronous>, transform_indices = @transform_3, window_bounds = array<i64: 2, 32>}, {pipeline_mode = #tpu.pipeline_mode<synchronous>, transform_indices = @transform_4, window_bounds = array<i64: 1, 32>}, {pipeline_mode = #tpu.pipeline_mode<synchronous>, transform_indices = @transform_5, window_bounds = array<i64: 1, 32>}, {transform_indices = @transform_6, window_bounds = array<i64: 8, 32>}]} {
    %c8_i32 = arith.constant 8 : i32
    %0 = arith.muli %arg0, %c8_i32 : i32
    %c0_i32 = arith.constant 0 : i32
    %c1_i32 = arith.constant 1 : i32
    %1 = arith.muli %c0_i32, %c1_i32 : i32
    %c0_i32_0 = arith.constant 0 : i32
    %2 = arith.addi %c0_i32_0, %1 : i32
    %c8_i32_1 = arith.constant 8 : i32
    %3 = arith.muli %2, %c8_i32_1 : i32
    %c0_i32_2 = arith.constant 0 : i32
    %4 = arith.addi %3, %c0_i32_2 : i32
    %5 = arith.addi %0, %4 : i32
    %6 = arith.index_cast %5 : i32 to index
    %7 = memref.load %arg1[%6] : memref<16xi32, #tpu.memory_space<smem>>
    %c0_i32_3 = arith.constant 0 : i32
    %c0_i32_4 = arith.constant 0 : i32
    %8 = tpu.memref_slice %arg3[%7, %c0_i32_4] : memref<100x32xf32, #tpu.memory_space<any>> -> memref<1x32xf32, #tpu.memory_space<any>>
    %c0_i32_5 = arith.constant 0 : i32
    %9 = tpu.memref_slice %arg9[%4, %c0_i32_5] : memref<8x32xf32, #tpu.memory_space<vmem>> -> memref<1x32xf32, #tpu.memory_space<vmem>>
    %10 = tpu.memref_slice %arg10[%c0_i32_3] : memref<2x!tpu.dma_semaphore, #tpu.memory_space<semaphore_mem>> -> memref<1x!tpu.dma_semaphore, #tpu.memory_space<semaphore_mem>>
    %11 = tpu.memref_squeeze %10 : memref<1x!tpu.dma_semaphore, #tpu.memory_space<semaphore_mem>> -> memref<!tpu.dma_semaphore, #tpu.memory_space<semaphore_mem>>
    tpu.enqueue_dma source(%8 : memref<1x32xf32, #tpu.memory_space<any>>) target(%9 : memref<1x32xf32, #tpu.memory_space<vmem>>) target_semaphore(%11 : memref<!tpu.dma_semaphore, #tpu.memory_space<semaphore_mem>>)
    %c8_i32_6 = arith.constant 8 : i32
    %12 = arith.muli %2, %c8_i32_6 : i32
    %c1_i32_7 = arith.constant 1 : i32
    %13 = arith.addi %12, %c1_i32_7 : i32
    %14 = arith.addi %0, %13 : i32
    %15 = arith.index_cast %14 : i32 to index
    %16 = memref.load %arg1[%15] : memref<16xi32, #tpu.memory_space<smem>>
    %c0_i32_8 = arith.constant 0 : i32
    %c0_i32_9 = arith.constant 0 : i32
    %17 = tpu.memref_slice %arg3[%16, %c0_i32_9] : memref<100x32xf32, #tpu.memory_space<any>> -> memref<1x32xf32, #tpu.memory_space<any>>
    %c0_i32_10 = arith.constant 0 : i32
    %18 = tpu.memref_slice %arg9[%13, %c0_i32_10] : memref<8x32xf32, #tpu.memory_space<vmem>> -> memref<1x32xf32, #tpu.memory_space<vmem>>
    %19 = tpu.memref_slice %arg10[%c0_i32_8] : memref<2x!tpu.dma_semaphore, #tpu.memory_space<semaphore_mem>> -> memref<1x!tpu.dma_semaphore, #tpu.memory_space<semaphore_mem>>
    %20 = tpu.memref_squeeze %19 : memref<1x!tpu.dma_semaphore, #tpu.memory_space<semaphore_mem>> -> memref<!tpu.dma_semaphore, #tpu.memory_space<semaphore_mem>>
    tpu.enqueue_dma source(%17 : memref<1x32xf32, #tpu.memory_space<any>>) target(%18 : memref<1x32xf32, #tpu.memory_space<vmem>>) target_semaphore(%20 : memref<!tpu.dma_semaphore, #tpu.memory_space<semaphore_mem>>)
    %c8_i32_11 = arith.constant 8 : i32
    %21 = arith.muli %2, %c8_i32_11 : i32
    %c2_i32 = arith.constant 2 : i32
    %22 = arith.addi %21, %c2_i32 : i32
    %23 = arith.addi %0, %22 : i32
    %24 = arith.index_cast %23 : i32 to index
    %25 = memref.load %arg1[%24] : memref<16xi32, #tpu.memory_space<smem>>
    %c0_i32_12 = arith.constant 0 : i32
    %c0_i32_13 = arith.constant 0 : i32
    %26 = tpu.memref_slice %arg3[%25, %c0_i32_13] : memref<100x32xf32, #tpu.memory_space<any>> -> memref<1x32xf32, #tpu.memory_space<any>>
    %c0_i32_14 = arith.constant 0 : i32
    %27 = tpu.memref_slice %arg9[%22, %c0_i32_14] : memref<8x32xf32, #tpu.memory_space<vmem>> -> memref<1x32xf32, #tpu.memory_space<vmem>>
    %28 = tpu.memref_slice %arg10[%c0_i32_12] : memref<2x!tpu.dma_semaphore, #tpu.memory_space<semaphore_mem>> -> memref<1x!tpu.dma_semaphore, #tpu.memory_space<semaphore_mem>>
    %29 = tpu.memref_squeeze %28 : memref<1x!tpu.dma_semaphore, #tpu.memory_space<semaphore_mem>> -> memref<!tpu.dma_semaphore, #tpu.memory_space<semaphore_mem>>
    tpu.enqueue_dma source(%26 : memref<1x32xf32, #tpu.memory_space<any>>) target(%27 : memref<1x32xf32, #tpu.memory_space<vmem>>) target_semaphore(%29 : memref<!tpu.dma_semaphore, #tpu.memory_space<semaphore_mem>>)
    %c8_i32_15 = arith.constant 8 : i32
    %30 = arith.muli %2, %c8_i32_15 : i32
    %c3_i32 = arith.constant 3 : i32
    %31 = arith.addi %30, %c3_i32 : i32
    %32 = arith.addi %0, %31 : i32
    %33 = arith.index_cast %32 : i32 to index
    %34 = memref.load %arg1[%33] : memref<16xi32, #tpu.memory_space<smem>>
    %c0_i32_16 = arith.constant 0 : i32
    %c0_i32_17 = arith.constant 0 : i32
    %35 = tpu.memref_slice %arg3[%34, %c0_i32_17] : memref<100x32xf32, #tpu.memory_space<any>> -> memref<1x32xf32, #tpu.memory_space<any>>
    %c0_i32_18 = arith.constant 0 : i32
    %36 = tpu.memref_slice %arg9[%31, %c0_i32_18] : memref<8x32xf32, #tpu.memory_space<vmem>> -> memref<1x32xf32, #tpu.memory_space<vmem>>
    %37 = tpu.memref_slice %arg10[%c0_i32_16] : memref<2x!tpu.dma_semaphore, #tpu.memory_space<semaphore_mem>> -> memref<1x!tpu.dma_semaphore, #tpu.memory_space<semaphore_mem>>
    %38 = tpu.memref_squeeze %37 : memref<1x!tpu.dma_semaphore, #tpu.memory_space<semaphore_mem>> -> memref<!tpu.dma_semaphore, #tpu.memory_space<semaphore_mem>>
    tpu.enqueue_dma source(%35 : memref<1x32xf32, #tpu.memory_space<any>>) target(%36 : memref<1x32xf32, #tpu.memory_space<vmem>>) target_semaphore(%38 : memref<!tpu.dma_semaphore, #tpu.memory_space<semaphore_mem>>)
    %c8_i32_19 = arith.constant 8 : i32
    %39 = arith.muli %2, %c8_i32_19 : i32
    %c4_i32 = arith.constant 4 : i32
    %40 = arith.addi %39, %c4_i32 : i32
    %41 = arith.addi %0, %40 : i32
    %42 = arith.index_cast %41 : i32 to index
    %43 = memref.load %arg1[%42] : memref<16xi32, #tpu.memory_space<smem>>
    %c0_i32_20 = arith.constant 0 : i32
    %c0_i32_21 = arith.constant 0 : i32
    %44 = tpu.memref_slice %arg3[%43, %c0_i32_21] : memref<100x32xf32, #tpu.memory_space<any>> -> memref<1x32xf32, #tpu.memory_space<any>>
    %c0_i32_22 = arith.constant 0 : i32
    %45 = tpu.memref_slice %arg9[%40, %c0_i32_22] : memref<8x32xf32, #tpu.memory_space<vmem>> -> memref<1x32xf32, #tpu.memory_space<vmem>>
    %46 = tpu.memref_slice %arg10[%c0_i32_20] : memref<2x!tpu.dma_semaphore, #tpu.memory_space<semaphore_mem>> -> memref<1x!tpu.dma_semaphore, #tpu.memory_space<semaphore_mem>>
    %47 = tpu.memref_squeeze %46 : memref<1x!tpu.dma_semaphore, #tpu.memory_space<semaphore_mem>> -> memref<!tpu.dma_semaphore, #tpu.memory_space<semaphore_mem>>
    tpu.enqueue_dma source(%44 : memref<1x32xf32, #tpu.memory_space<any>>) target(%45 : memref<1x32xf32, #tpu.memory_space<vmem>>) target_semaphore(%47 : memref<!tpu.dma_semaphore, #tpu.memory_space<semaphore_mem>>)
    %c8_i32_23 = arith.constant 8 : i32
    %48 = arith.muli %2, %c8_i32_23 : i32
    %c5_i32 = arith.constant 5 : i32
    %49 = arith.addi %48, %c5_i32 : i32
    %50 = arith.addi %0, %49 : i32
    %51 = arith.index_cast %50 : i32 to index
    %52 = memref.load %arg1[%51] : memref<16xi32, #tpu.memory_space<smem>>
    %c0_i32_24 = arith.constant 0 : i32
    %c0_i32_25 = arith.constant 0 : i32
    %53 = tpu.memref_slice %arg3[%52, %c0_i32_25] : memref<100x32xf32, #tpu.memory_space<any>> -> memref<1x32xf32, #tpu.memory_space<any>>
    %c0_i32_26 = arith.constant 0 : i32
    %54 = tpu.memref_slice %arg9[%49, %c0_i32_26] : memref<8x32xf32, #tpu.memory_space<vmem>> -> memref<1x32xf32, #tpu.memory_space<vmem>>
    %55 = tpu.memref_slice %arg10[%c0_i32_24] : memref<2x!tpu.dma_semaphore, #tpu.memory_space<semaphore_mem>> -> memref<1x!tpu.dma_semaphore, #tpu.memory_space<semaphore_mem>>
    %56 = tpu.memref_squeeze %55 : memref<1x!tpu.dma_semaphore, #tpu.memory_space<semaphore_mem>> -> memref<!tpu.dma_semaphore, #tpu.memory_space<semaphore_mem>>
    tpu.enqueue_dma source(%53 : memref<1x32xf32, #tpu.memory_space<any>>) target(%54 : memref<1x32xf32, #tpu.memory_space<vmem>>) target_semaphore(%56 : memref<!tpu.dma_semaphore, #tpu.memory_space<semaphore_mem>>)
    %c8_i32_27 = arith.constant 8 : i32
    %57 = arith.muli %2, %c8_i32_27 : i32
    %c6_i32 = arith.constant 6 : i32
    %58 = arith.addi %57, %c6_i32 : i32
    %59 = arith.addi %0, %58 : i32
    %60 = arith.index_cast %59 : i32 to index
    %61 = memref.load %arg1[%60] : memref<16xi32, #tpu.memory_space<smem>>
    %c0_i32_28 = arith.constant 0 : i32
    %c0_i32_29 = arith.constant 0 : i32
    %62 = tpu.memref_slice %arg3[%61, %c0_i32_29] : memref<100x32xf32, #tpu.memory_space<any>> -> memref<1x32xf32, #tpu.memory_space<any>>
    %c0_i32_30 = arith.constant 0 : i32
    %63 = tpu.memref_slice %arg9[%58, %c0_i32_30] : memref<8x32xf32, #tpu.memory_space<vmem>> -> memref<1x32xf32, #tpu.memory_space<vmem>>
    %64 = tpu.memref_slice %arg10[%c0_i32_28] : memref<2x!tpu.dma_semaphore, #tpu.memory_space<semaphore_mem>> -> memref<1x!tpu.dma_semaphore, #tpu.memory_space<semaphore_mem>>
    %65 = tpu.memref_squeeze %64 : memref<1x!tpu.dma_semaphore, #tpu.memory_space<semaphore_mem>> -> memref<!tpu.dma_semaphore, #tpu.memory_space<semaphore_mem>>
    tpu.enqueue_dma source(%62 : memref<1x32xf32, #tpu.memory_space<any>>) target(%63 : memref<1x32xf32, #tpu.memory_space<vmem>>) target_semaphore(%65 : memref<!tpu.dma_semaphore, #tpu.memory_space<semaphore_mem>>)
    %c8_i32_31 = arith.constant 8 : i32
    %66 = arith.muli %2, %c8_i32_31 : i32
    %c7_i32 = arith.constant 7 : i32
    %67 = arith.addi %66, %c7_i32 : i32
    %68 = arith.addi %0, %67 : i32
    %69 = arith.index_cast %68 : i32 to index
    %70 = memref.load %arg1[%69] : memref<16xi32, #tpu.memory_space<smem>>
    %c0_i32_32 = arith.constant 0 : i32
    %c0_i32_33 = arith.constant 0 : i32
    %71 = tpu.memref_slice %arg3[%70, %c0_i32_33] : memref<100x32xf32, #tpu.memory_space<any>> -> memref<1x32xf32, #tpu.memory_space<any>>
    %c0_i32_34 = arith.constant 0 : i32
    %72 = tpu.memref_slice %arg9[%67, %c0_i32_34] : memref<8x32xf32, #tpu.memory_space<vmem>> -> memref<1x32xf32, #tpu.memory_space<vmem>>
    %73 = tpu.memref_slice %arg10[%c0_i32_32] : memref<2x!tpu.dma_semaphore, #tpu.memory_space<semaphore_mem>> -> memref<1x!tpu.dma_semaphore, #tpu.memory_space<semaphore_mem>>
    %74 = tpu.memref_squeeze %73 : memref<1x!tpu.dma_semaphore, #tpu.memory_space<semaphore_mem>> -> memref<!tpu.dma_semaphore, #tpu.memory_space<semaphore_mem>>
    tpu.enqueue_dma source(%71 : memref<1x32xf32, #tpu.memory_space<any>>) target(%72 : memref<1x32xf32, #tpu.memory_space<vmem>>) target_semaphore(%74 : memref<!tpu.dma_semaphore, #tpu.memory_space<semaphore_mem>>)
    %c1_i32_35 = arith.constant 1 : i32
    %c0 = arith.constant 0 : index
    %c0_36 = arith.constant 0 : index
    %75 = vector.load %arg2[%c0, %c0_36] : memref<8x1xi32, #tpu.memory_space<vmem>>, vector<8x1xi32>
    %c0_37 = arith.constant 0 : index
    %c0_38 = arith.constant 0 : index
    %76 = vector.load %arg5[%c0_37, %c0_38] : memref<2x32xf32, #tpu.memory_space<vmem>>, vector<1x32xf32>
    %77 = vector.shape_cast %76 : vector<1x32xf32> to vector<32xf32>
    %78 = vector.shape_cast %77 : vector<32xf32> to vector<1x32xf32>
    %c1 = arith.constant 1 : index
    %c0_39 = arith.constant 0 : index
    %79 = vector.load %arg5[%c1, %c0_39] : memref<2x32xf32, #tpu.memory_space<vmem>>, vector<1x32xf32>
    %80 = vector.shape_cast %79 : vector<1x32xf32> to vector<32xf32>
    %81 = vector.shape_cast %80 : vector<32xf32> to vector<1x32xf32>
    %82 = vector.shape_cast %78 : vector<1x32xf32> to vector<1x32xf32>
    %83 = vector.broadcast %82 : vector<1x32xf32> to vector<8x32xf32>
    %c1_i32_40 = arith.constant 1 : i32
    %84 = vector.broadcast %c1_i32_40 : i32 to vector<8x1xi32>
    %85 = arith.cmpi eq, %75, %84 : vector<8x1xi32>
    %86 = vector.shape_cast %85 : vector<8x1xi1> to vector<8x1xi1>
    %87 = vector.broadcast %86 : vector<8x1xi1> to vector<8x32xi1>
    %88 = vector.shape_cast %81 : vector<1x32xf32> to vector<1x32xf32>
    %89 = vector.broadcast %88 : vector<1x32xf32> to vector<8x32xf32>
    %90 = arith.select %87, %89, %83 : vector<8x32xi1>, vector<8x32xf32>
    %c0_41 = arith.constant 0 : index
    %c0_42 = arith.constant 0 : index
    %91 = vector.load %arg4[%c0_41, %c0_42] : memref<8x32xf32, #tpu.memory_space<vmem>>, vector<8x32xf32>
    %92 = arith.addf %91, %90 : vector<8x32xf32>
    %c0_i32_43 = arith.constant 0 : i32
    %93 = tpu.memref_slice %arg10[%c0_i32_43] : memref<2x!tpu.dma_semaphore, #tpu.memory_space<semaphore_mem>> -> memref<1x!tpu.dma_semaphore, #tpu.memory_space<semaphore_mem>>
    %94 = tpu.memref_squeeze %93 : memref<1x!tpu.dma_semaphore, #tpu.memory_space<semaphore_mem>> -> memref<!tpu.dma_semaphore, #tpu.memory_space<semaphore_mem>>
    tpu.wait_dma2 semaphore(%94 : memref<!tpu.dma_semaphore, #tpu.memory_space<semaphore_mem>>) src(%arg9 : memref<8x32xf32, #tpu.memory_space<vmem>>) dst(%arg9 : memref<8x32xf32, #tpu.memory_space<vmem>>)
    %c0_44 = arith.constant 0 : index
    %c0_45 = arith.constant 0 : index
    %95 = vector.load %arg9[%c0_44, %c0_45] : memref<8x32xf32, #tpu.memory_space<vmem>>, vector<8x32xf32>
    %96 = arith.addf %95, %92 : vector<8x32xf32>
    %cst = arith.constant dense<0.000000e+00> : vector<8xf32>
    %97 = vector.multi_reduction <add>, %96, %cst [1] : vector<8x32xf32> to vector<8xf32>
    %98 = vector.shape_cast %97 : vector<8xf32> to vector<8x1xf32>
    %cst_46 = arith.constant 3.200000e+01 : f32
    %99 = vector.broadcast %cst_46 : f32 to vector<8x1xf32>
    %100 = arith.divf %98, %99 : vector<8x1xf32>
    %101 = vector.broadcast %100 : vector<8x1xf32> to vector<8x32xf32>
    %102 = arith.subf %96, %101 : vector<8x32xf32>
    %103 = arith.mulf %102, %102 : vector<8x32xf32>
    %cst_47 = arith.constant dense<0.000000e+00> : vector<8xf32>
    %104 = vector.multi_reduction <add>, %103, %cst_47 [1] : vector<8x32xf32> to vector<8xf32>
    %105 = vector.shape_cast %104 : vector<8xf32> to vector<8x1xf32>
    %cst_48 = arith.constant 3.200000e+01 : f32
    %106 = vector.broadcast %cst_48 : f32 to vector<8x1xf32>
    %107 = arith.divf %105, %106 : vector<8x1xf32>
    %cst_49 = arith.constant 9.99999996E-13 : f32
    %108 = vector.broadcast %cst_49 : f32 to vector<8x1xf32>
    %109 = arith.addf %107, %108 : vector<8x1xf32>
    %110 = math.rsqrt %109 : vector<8x1xf32>
    %111 = vector.broadcast %110 : vector<8x1xf32> to vector<8x32xf32>
    %112 = arith.mulf %102, %111 : vector<8x32xf32>
    %c0_50 = arith.constant 0 : index
    %c0_51 = arith.constant 0 : index
    %113 = vector.load %arg6[%c0_50, %c0_51] : memref<1x32xf32, #tpu.memory_space<vmem>>, vector<1x32xf32>
    %114 = vector.broadcast %113 : vector<1x32xf32> to vector<8x32xf32>
    %115 = arith.mulf %112, %114 : vector<8x32xf32>
    %c0_52 = arith.constant 0 : index
    %c0_53 = arith.constant 0 : index
    %116 = vector.load %arg7[%c0_52, %c0_53] : memref<1x32xf32, #tpu.memory_space<vmem>>, vector<1x32xf32>
    %117 = vector.broadcast %116 : vector<1x32xf32> to vector<8x32xf32>
    %118 = arith.addf %115, %117 : vector<8x32xf32>
    %c0_54 = arith.constant 0 : index
    %c0_55 = arith.constant 0 : index
    %119 = vector.load %arg8[%c0_54, %c0_55] : memref<8x32xf32, #tpu.memory_space<vmem>>, vector<8x32xf32>
    tpu.vector_store %arg8[%c0_54, %c0_55], %118 {strides = array<i32>} : memref<8x32xf32, #tpu.memory_space<vmem>>, vector<8x32xf32>,
    return
  }
  func.func @transform_0(%arg0: i32, %arg1: memref<16xi32, #tpu.memory_space<smem>>) -> (i32, i32) {
    %c0_i32 = arith.constant 0 : i32
    %c0_i32_0 = arith.constant 0 : i32
    return %arg0, %c0_i32 : i32, i32
  }
  func.func @transform_2(%arg0: i32, %arg1: memref<16xi32, #tpu.memory_space<smem>>) -> (i32, i32) {
    %c1_i32 = arith.constant 1 : i32
    %c0_i32 = arith.constant 0 : i32
    %0 = arith.cmpi eq, %c1_i32, %c0_i32 : i32
    %c1_i32_0 = arith.constant 1 : i32
    %1 = arith.select %0, %c1_i32_0, %c1_i32 : i32
    %2 = arith.remsi %arg0, %1 : i32
    %c0_i32_1 = arith.constant 0 : i32
    %3 = arith.cmpi ne, %2, %c0_i32_1 : i32
    %c0_i32_2 = arith.constant 0 : i32
    %4 = arith.cmpi slt, %2, %c0_i32_2 : i32
    %c0_i32_3 = arith.constant 0 : i32
    %5 = arith.cmpi slt, %1, %c0_i32_3 : i32
    %6 = arith.xori %4, %5 : i1
    %7 = arith.andi %6, %3 : i1
    %8 = arith.addi %2, %1 : i32
    %9 = arith.select %7, %8, %2 : i32
    %c0_i32_4 = arith.constant 0 : i32
    %c0_i32_5 = arith.constant 0 : i32
    return %9, %c0_i32_4 : i32, i32
  }
  func.func @transform_3(%arg0: i32, %arg1: memref<16xi32, #tpu.memory_space<smem>>) -> (i32, i32) {
    %c0_i32 = arith.constant 0 : i32
    %c0_i32_0 = arith.constant 0 : i32
    %c0_i32_1 = arith.constant 0 : i32
    return %c0_i32, %c0_i32_0 : i32, i32
  }
  func.func @transform_4(%arg0: i32, %arg1: memref<16xi32, #tpu.memory_space<smem>>) -> (i32, i32) {
    %c0_i32 = arith.constant 0 : i32
    %c0_i32_0 = arith.constant 0 : i32
    %c0_i32_1 = arith.constant 0 : i32
    return %c0_i32, %c0_i32_0 : i32, i32
  }
  func.func @transform_5(%arg0: i32, %arg1: memref<16xi32, #tpu.memory_space<smem>>) -> (i32, i32) {
    %c0_i32 = arith.constant 0 : i32
    %c0_i32_0 = arith.constant 0 : i32
    %c0_i32_1 = arith.constant 0 : i32
    return %c0_i32, %c0_i32_0 : i32, i32
  }
  func.func @transform_6(%arg0: i32, %arg1: memref<16xi32, #tpu.memory_space<smem>>) -> (i32, i32) {
    %c0_i32 = arith.constant 0 : i32
    %c0_i32_0 = arith.constant 0 : i32
    return %arg0, %c0_i32 : i32, i32
  }
}

</mosaic_0001>

<llo_original>
// kernel: tpu_custom_call.1
$region0: #{tpu_custom_call.1}
  #allocation0 [shape = 'u32[]', space=smem, size = 0x4, offset = 0x4, fixed_abs, tag = 'smem constant byte address 0x4 - core index']
  #allocation1 [shape = 'u32[144,128]{1,0:T(1,128)}', space=vmem, size = 0x12000, scoped, tag = 'internal scratch']
  #allocation2 [shape = 'f32[8,32]{1,0:T(8,128)}', space=vmem, size = 0x1000, scoped, tag = 'scratch operand']
  #allocation3 [shape = 's32[2]{0}', space=sflag, size = 0x8, scoped, tag = 'scratch operand']
  #allocation4 [shape = 's32[1]{0}', space=sflag, size = 0x4, scoped, tag = 'scoped memory for tpu_custom_call.1']
  #allocation5 [shape = 'u8[512]{0}', space=smem, size = 0x200, scoped, tag = 'prefetched SMEM operand 0']
  #allocation8 [shape = 's32[]', space=sflag, size = 0x4, offset = 0, fixed_abs, tag = 'sflag constant byte address 0x0 - dummy sync flag']
  #allocation9 [shape = 's32[]', space=sflag, size = 0x4, offset = 0, fixed_abs, tag = 'sflag constant byte address 0x0 - dummy sync flag']
  #allocation10 [shape = 's32[]', space=sflag, size = 0x4, offset = 0, fixed_abs, tag = 'sflag constant byte address 0x0 - dummy sync flag']
  #allocation11 [shape = 's32[]', space=sflag, size = 0x4, offset = 0, fixed_abs, tag = 'sflag constant byte address 0x0 - dummy sync flag']
  #allocation12 [shape = 's32[]', space=sflag, size = 0x4, offset = 0, fixed_abs, tag = 'sflag constant byte address 0x0 - dummy sync flag']
  #allocation13 [shape = 's32[]', space=sflag, size = 0x4, offset = 0, fixed_abs, tag = 'sflag constant byte address 0x0 - dummy sync flag']
  #allocation14 [shape = 's32[]', space=sflag, size = 0x4, offset = 0, fixed_abs, tag = 'sflag constant byte address 0x0 - dummy sync flag']
  #allocation15 [shape = 's32[]', space=sflag, size = 0x4, offset = 0, fixed_abs, tag = 'sflag constant byte address 0x0 - dummy sync flag']
  %s0 = inlined_call_operand.vmem [shape: s32[16], index: 0, kind: input, shape index: {}]
  %s1 = inlined_call_operand.vmem [shape: s32[16,1], index: 1, kind: input, shape index: {}]
  %s2 = inlined_call_operand.vmem [shape: f32[100,32], index: 2, kind: input, shape index: {}]
  %s3 = inlined_call_operand.vmem [shape: f32[8,32], index: 3, kind: input, shape index: {}]
  %s4 = inlined_call_operand.vmem [shape: f32[2,32], index: 4, kind: input, shape index: {}]
  %s5 = inlined_call_operand.vmem [shape: f32[1,32], index: 5, kind: input, shape index: {}]
  %s6 = inlined_call_operand.vmem [shape: f32[1,32], index: 6, kind: input, shape index: {}]
  %s7 = inlined_call_operand.hbm [shape: f32[16,32], index: 7, kind: output, shape index: {}]
  %s8 = sld [smem:[#allocation0]]
  $region293: #{tpu_custom_call.1} parent=0
    _
  %s10 = ssub.s32 1, %s8
  %s11 = scalar_select 0, %s10, %s8
  %s12 = sshll.u32 %s0, 4
  %s13 = int_to_ptr.vmem [resolvable:$true] %s12
  %15 = dma.vmem_to_smem %s13, 16, [#allocation5], [#allocation4]
  %16 = dma.done [#allocation4], 16
  %17 = sfence
  $region1: #{tpu_custom_call.1} parent=0
    #allocation6 [shape = 'u8[8192]{0}', space=vmem, size = 0x2000, scoped, tag = 'output window, operand 0']
    #allocation7 [shape = 's32[2]{0}', space=sflag, size = 0x8, scoped, tag = 'scoped memory for tpu_custom_call.1']
    %18 = vsyncpa [#allocation7], 0
    %s19 = scalar_lea.sflag [#allocation7], 1
    %20 = vsyncpa %s19, 0
    loop: start=0, step=1, limit=4
    $region2: #{tpu_custom_call.1} parent=1 // loop_pre_header
      _
    $region3: #{tpu_custom_call.1} parent=1 // loop_header
      %s22 = sphi 0, %s26
      %p23 = scmp.ge.s32.totalorder %s22, 4
      %s32 = sphi 0, %s34
      %s35 = sphi 0, %s32
      %s36 = sphi 0, %s35
      %s52 = sphi 0, %s36
      %s56 = sphi 0, %s56
      %s58 = sphi 0, %s56
      %s59 = sphi 0, %s58
      %s73 = sphi 0, %s59
      %s77 = sphi 0, %s77
      %s79 = sphi 0, %s77
      %s80 = sphi 0, %s79
      %s94 = sphi 0, %s80
      %s98 = sphi 0, %s98
      %s100 = sphi 0, %s98
      %s101 = sphi 0, %s100
      %s115 = sphi 0, %s101
      %s119 = sphi 0, %s119
      %s121 = sphi 0, %s119
      %s122 = sphi 0, %s121
      %s136 = sphi 0, %s122
      %s142 = sphi 0, %s144
      %s145 = sphi 0, %s142
      %s146 = sphi 0, %s145
      %s162 = sphi 0, %s146
    $region4: #{tpu_custom_call.1} parent=1 // loop_header_branch
      %25 = sbr.rel (%p23) target = $region8
    $region5: #{tpu_custom_call.1} parent=1 // loop_body
      %s27 = ssub.s32 %s22, 1
      %s28 = ssub.s32 %s22, 2
      %s29 = sadd.s32 %s22, 1
      %s30 = ssub.s32 %s22, %s29
      %p31 = scmp.eq.s32.totalorder %s30, 0
      %s33 = sadd.s32 %s32, 1
      %s34 = scalar_select %p31, %s32, %s33
      %p37 = pneg %p31
      %p38 = scmp.eq.s32.totalorder %s22, 1
      %p39 = por %p37, %p38
      %p40 = scmp.ne.s32.totalorder %s32, %s35
      %p41 = scmp.eq.s32.totalorder %s22, 0
      %p42 = por %p40, %p41
      %p43 = scmp.ne.s32.totalorder %s32, %s35
      %p44 = scmp.eq.s32.totalorder %s27, 1
      %p45 = por %p43, %p44
      %p46 = scmp.ne.s32.totalorder %s35, %s36
      %p47 = scmp.eq.s32.totalorder %s27, 0
      %p48 = por %p46, %p47
      %p49 = scmp.ne.s32.totalorder %s35, %s36
      %p50 = scmp.eq.s32.totalorder %s28, 1
      %p51 = por %p49, %p50
      %p53 = scmp.ne.s32.totalorder %s36, %s52
      %p54 = scmp.eq.s32.totalorder %s28, 0
      %p55 = por %p53, %p54
      %s57 = sadd.s32 %s56, 1
      %p60 = scmp.eq.s32.totalorder %s22, 1
      %p61 = scmp.ne.s32.totalorder %s56, %s58
      %p62 = scmp.eq.s32.totalorder %s22, 0
      %p63 = por %p61, %p62
      %p64 = scmp.ne.s32.totalorder %s56, %s58
      %p65 = scmp.eq.s32.totalorder %s27, 1
      %p66 = por %p64, %p65
      %p67 = scmp.ne.s32.totalorder %s58, %s59
      %p68 = scmp.eq.s32.totalorder %s27, 0
      %p69 = por %p67, %p68
      %p70 = scmp.ne.s32.totalorder %s58, %s59
      %p71 = scmp.eq.s32.totalorder %s28, 1
      %p72 = por %p70, %p71
      %p74 = scmp.ne.s32.totalorder %s59, %s73
      %p75 = scmp.eq.s32.totalorder %s28, 0
      %p76 = por %p74, %p75
      %s78 = sadd.s32 %s77, 1
      %p81 = scmp.eq.s32.totalorder %s22, 1
      %p82 = scmp.ne.s32.totalorder %s77, %s79
      %p83 = scmp.eq.s32.totalorder %s22, 0
      %p84 = por %p82, %p83
      %p85 = scmp.ne.s32.totalorder %s77, %s79
      %p86 = scmp.eq.s32.totalorder %s27, 1
      %p87 = por %p85, %p86
      %p88 = scmp.ne.s32.totalorder %s79, %s80
      %p89 = scmp.eq.s32.totalorder %s27, 0
      %p90 = por %p88, %p89
      %p91 = scmp.ne.s32.totalorder %s79, %s80
      %p92 = scmp.eq.s32.totalorder %s28, 1
      %p93 = por %p91, %p92
      %p95 = scmp.ne.s32.totalorder %s80, %s94
      %p96 = scmp.eq.s32.totalorder %s28, 0
      %p97 = por %p95, %p96
      %s99 = sadd.s32 %s98, 1
      %p102 = scmp.eq.s32.totalorder %s22, 1
      %p103 = scmp.ne.s32.totalorder %s98, %s100
      %p104 = scmp.eq.s32.totalorder %s22, 0
      %p105 = por %p103, %p104
      %p106 = scmp.ne.s32.totalorder %s98, %s100
      %p107 = scmp.eq.s32.totalorder %s27, 1
      %p108 = por %p106, %p107
      %p109 = scmp.ne.s32.totalorder %s100, %s101
      %p110 = scmp.eq.s32.totalorder %s27, 0
      %p111 = por %p109, %p110
      %p112 = scmp.ne.s32.totalorder %s100, %s101
      %p113 = scmp.eq.s32.totalorder %s28, 1
      %p114 = por %p112, %p113
      %p116 = scmp.ne.s32.totalorder %s101, %s115
      %p117 = scmp.eq.s32.totalorder %s28, 0
      %p118 = por %p116, %p117
      %s120 = sadd.s32 %s119, 1
      %p123 = scmp.eq.s32.totalorder %s22, 1
      %p124 = scmp.ne.s32.totalorder %s119, %s121
      %p125 = scmp.eq.s32.totalorder %s22, 0
      %p126 = por %p124, %p125
      %p127 = scmp.ne.s32.totalorder %s119, %s121
      %p128 = scmp.eq.s32.totalorder %s27, 1
      %p129 = por %p127, %p128
      %p130 = scmp.ne.s32.totalorder %s121, %s122
      %p131 = scmp.eq.s32.totalorder %s27, 0
      %p132 = por %p130, %p131
      %p133 = scmp.ne.s32.totalorder %s121, %s122
      %p134 = scmp.eq.s32.totalorder %s28, 1
      %p135 = por %p133, %p134
      %p137 = scmp.ne.s32.totalorder %s122, %s136
      %p138 = scmp.eq.s32.totalorder %s28, 0
      %p139 = por %p137, %p138
      %s140 = ssub.s32 %s22, %s29
      %p141 = scmp.eq.s32.totalorder %s140, 0
      %s143 = sadd.s32 %s142, 1
      %s144 = scalar_select %p141, %s142, %s143
      %p147 = pneg %p141
      %p148 = scmp.eq.s32.totalorder %s22, 1
      %p149 = por %p147, %p148
      %p150 = scmp.ne.s32.totalorder %s142, %s145
      %p151 = scmp.eq.s32.totalorder %s22, 0
      %p152 = por %p150, %p151
      %p153 = scmp.ne.s32.totalorder %s142, %s145
      %p154 = scmp.eq.s32.totalorder %s27, 1
      %p155 = por %p153, %p154
      %p156 = scmp.ne.s32.totalorder %s145, %s146
      %p157 = scmp.eq.s32.totalorder %s27, 0
      %p158 = por %p156, %p157
      %p159 = scmp.ne.s32.totalorder %s145, %s146
      %p160 = scmp.eq.s32.totalorder %s28, 1
      %p161 = por %p159, %p160
      %p163 = scmp.ne.s32.totalorder %s146, %s162
      %p164 = scmp.eq.s32.totalorder %s28, 0
      %p165 = por %p163, %p164
      %p166 = scmp.le.s32.totalorder 1, %s22
      %p167 = scmp.lt.s32.totalorder %s22, 3
      %p168 = pnand %p166, %p167
      %p169 = pneg %p168
      // Predicated region
      $region9: #{tpu_custom_call.1} parent=5 // pred_check
        _
      $region10: #{tpu_custom_call.1} parent=5 // pred_check_branch
        %171 = sbr.rel (%p168) target = $region12
      $region11: #{tpu_custom_call.1} parent=5 // pred_region
        %s172 = ssub.s32 %s22, 1
        // Predicated region
        $region13: #{tpu_custom_call.1} parent=11 // pred_check
          %p173 = pneg %p69
        $region14: #{tpu_custom_call.1} parent=11 // pred_check_branch
          %175 = sbr.rel (%p173) target = $region16
        $region15: #{tpu_custom_call.1} parent=11 // pred_region
          _
        $region16: #{tpu_custom_call.1} parent=11 // pred_fallthru
          _
        // Predicated region
        $region17: #{tpu_custom_call.1} parent=11 // pred_check
          %p176 = pneg %p90
        $region18: #{tpu_custom_call.1} parent=11 // pred_check_branch
          %178 = sbr.rel (%p176) target = $region20
        $region19: #{tpu_custom_call.1} parent=11 // pred_region
          _
        $region20: #{tpu_custom_call.1} parent=11 // pred_fallthru
          _
        // Predicated region
        $region21: #{tpu_custom_call.1} parent=11 // pred_check
          %p179 = pneg %p111
        $region22: #{tpu_custom_call.1} parent=11 // pred_check_branch
          %181 = sbr.rel (%p179) target = $region24
        $region23: #{tpu_custom_call.1} parent=11 // pred_region
          _
        $region24: #{tpu_custom_call.1} parent=11 // pred_fallthru
          _
        // Predicated region
        $region25: #{tpu_custom_call.1} parent=11 // pred_check
          %p182 = pneg %p132
        $region26: #{tpu_custom_call.1} parent=11 // pred_check_branch
          %184 = sbr.rel (%p182) target = $region28
        $region27: #{tpu_custom_call.1} parent=11 // pred_region
          _
        $region28: #{tpu_custom_call.1} parent=11 // pred_fallthru
          _
      $region12: #{tpu_custom_call.1} parent=5 // pred_fallthru
        _
      %p185 = scmp.lt.s32.totalorder %s22, 2
      // Predicated region
      $region29: #{tpu_custom_call.1} parent=5 // pred_check
        %p186 = pneg %p185
      $region30: #{tpu_custom_call.1} parent=5 // pred_check_branch
        %188 = sbr.rel (%p186) target = $region32
      $region31: #{tpu_custom_call.1} parent=5 // pred_region
        // Predicated region
        $region33: #{tpu_custom_call.1} parent=31 // pred_check
          %p189 = pneg %p42
        $region34: #{tpu_custom_call.1} parent=31 // pred_check_branch
          %191 = sbr.rel (%p189) target = $region36
        $region35: #{tpu_custom_call.1} parent=31 // pred_region
          %p192 = scmp.lt.s32.totalorder %s22, 1
          %s193 = scalar_select %p192, %s22, 1
          %s194 = smul.addr %s193, 8
          %s195 = scalar_lea.vmem %s1, %s194
        $region36: #{tpu_custom_call.1} parent=31 // pred_fallthru
          _
      $region32: #{tpu_custom_call.1} parent=5 // pred_fallthru
        _
      %p196 = scmp.le.s32.totalorder 1, %s22
      %p197 = scmp.lt.s32.totalorder %s22, 3
      %p198 = pnand %p196, %p197
      %p199 = pneg %p198
      // Predicated region
      $region37: #{tpu_custom_call.1} parent=5 // pred_check
        _
      $region38: #{tpu_custom_call.1} parent=5 // pred_check_branch
        %201 = sbr.rel (%p198) target = $region40
      $region39: #{tpu_custom_call.1} parent=5 // pred_region
        %s202 = ssub.s32 %s22, 1
        %p203 = scmp.lt.s32.totalorder %s27, 1
        %s204 = scalar_select %p203, %s27, 1
        %s205 = smul.addr %s204, 8
        %s206 = scalar_lea.vmem %s1, %s205
        %p207 = pneg %p48
        %p208 = pneg %p45
        %p209 = pneg %p69
        %p210 = pneg %p66
        %p211 = pneg %p90
        %p212 = pneg %p87
        %p213 = pneg %p111
        %p214 = pneg %p108
        %p215 = pneg %p132
        %p216 = pneg %p129
        %p217 = pneg %p158
        %p218 = pneg %p155
        %s219 = sand.u32 %s145, 1
        %s220 = scalar_lea.sflag [#allocation7], %s219
        %s221 = sand.u32 %s145, 1
        %s222 = smul.addr %s221, 8
        %s223 = scalar_lea.vmem [#allocation6], %s222
        %p224 = scmp.lt.s32.totalorder %s27, 1
        %s225 = scalar_select %p224, %s27, 1
        %s226 = smul.addr %s225, 8
        %s227 = scalar_lea.vmem %s1, %s226
        %s228 = smul.u32 %s27, 8
        %s229 = sld [smem:[#allocation5 + %s228]]
        %s230 = scalar_lea.vmem %s2, %s229
        %p232 = scmp.lt.u32.totalorder 1, 8
        %p233 = pneg %p232
        // Predicated region
        $region41: #{tpu_custom_call.1} parent=39 // pred_check
          _
        $region42: #{tpu_custom_call.1} parent=39 // pred_check_branch
          %235 = sbr.rel (%p232) target = $region44
        $region43: #{tpu_custom_call.1} parent=39 // pred_region
          %s251 = sand.u32 1, 7
          %p252 = scmp.eq.s32.totalorder %s251, 0
          %p253 = pneg %p252
          // Predicated region
          $region56: #{tpu_custom_call.1} parent=43 // pred_check
            _
          $region57: #{tpu_custom_call.1} parent=43 // pred_check_branch
            %255 = sbr.rel (%p252) target = $region59
          $region58: #{tpu_custom_call.1} parent=43 // pred_region
            %s256 = sand.u32 1, 7
            %s257 = ssub.s32 1, %s256
            %s258 = scalar_lea.vmem %s230, %s257
            %s259 = ssub.s32 1, %s256
            %s260 = scalar_lea.vmem [#allocation2], %s259
            %s261 = sshll.u32 1, %s256
            %s262 = ssub.s32 %s261, 1
            loop: start=0, step=1, limit=1
            $region60: #{tpu_custom_call.1} parent=58 // loop_pre_header
              _
            $region61: #{tpu_custom_call.1} parent=58 // loop_header
              %s264 = sphi 0, %s268
              %p265 = scmp.ge.s32.totalorder %s264, 1
              %s269 = sphi %s258, %s258
              %s270 = sphi %s260, %s260
            $region62: #{tpu_custom_call.1} parent=58 // loop_header_branch
              %267 = sbr.rel (%p265) target = $region66
            $region63: #{tpu_custom_call.1} parent=58 // loop_body
              %v271 = vld [vmem:[%s269] sm:%s262]
              %272 = vst [vmem:[%s270] sm:%s262] %v271
            $region64: #{tpu_custom_call.1} parent=58 // loop_footer
              %s268 = sadd.s32 1, %s264
            $region65: #{tpu_custom_call.1} parent=58 // loop_footer_branch
              %263 = sbr.rel target = $region61
            $region66: #{tpu_custom_call.1} parent=58 // loop_exit
              _
          $region59: #{tpu_custom_call.1} parent=43 // pred_fallthru
            _
        $region44: #{tpu_custom_call.1} parent=39 // pred_fallthru
          _
        // Predicated region
        $region45: #{tpu_custom_call.1} parent=39 // pred_check
          %p236 = pneg %p232
        $region46: #{tpu_custom_call.1} parent=39 // pred_check_branch
          %238 = sbr.rel (%p236) target = $region48
        $region47: #{tpu_custom_call.1} parent=39 // pred_region
          %s239 = sshll.u32 1, 1
          %s240 = ssub.s32 %s239, 1
          loop: start=0, step=1, limit=1
          $region49: #{tpu_custom_call.1} parent=47 // loop_pre_header
            _
          $region50: #{tpu_custom_call.1} parent=47 // loop_header
            %s242 = sphi 0, %s246
            %p243 = scmp.ge.s32.totalorder %s242, 1
            %s247 = sphi %s230, %s230
            %s248 = sphi [#allocation2], [#allocation2]
          $region51: #{tpu_custom_call.1} parent=47 // loop_header_branch
            %245 = sbr.rel (%p243) target = $region55
          $region52: #{tpu_custom_call.1} parent=47 // loop_body
            %v249 = vld [vmem:[%s247] sm:%s240]
            %250 = vst [vmem:[%s248] sm:%s240] %v249
          $region53: #{tpu_custom_call.1} parent=47 // loop_footer
            %s246 = sadd.s32 1, %s242
          $region54: #{tpu_custom_call.1} parent=47 // loop_footer_branch
            %241 = sbr.rel target = $region50
          $region55: #{tpu_custom_call.1} parent=47 // loop_exit
            _
        $region48: #{tpu_custom_call.1} parent=39 // pred_fallthru
          _
        // Predicated region
        $region67: #{tpu_custom_call.1} parent=39 // pred_check
          _
        $region68: #{tpu_custom_call.1} parent=39 // pred_check_branch
          %275 = sbr.rel (0) target = $region70
        $region69: #{tpu_custom_call.1} parent=39 // pred_region
          %276 = vsyncadd [#allocation3], 16
        $region70: #{tpu_custom_call.1} parent=39 // pred_fallthru
          _
        %s277 = sadd.s32 %s228, 1
        %s278 = sld [smem:[#allocation5 + %s277]]
        %s279 = scalar_lea.vmem %s2, %s278
        %s280 = scalar_lea.vmem [#allocation2], 1
        %p282 = scmp.lt.u32.totalorder 1, 8
        %p283 = pneg %p282
        // Predicated region
        $region71: #{tpu_custom_call.1} parent=39 // pred_check
          _
        $region72: #{tpu_custom_call.1} parent=39 // pred_check_branch
          %285 = sbr.rel (%p282) target = $region74
        $region73: #{tpu_custom_call.1} parent=39 // pred_region
          %s301 = sand.u32 1, 7
          %p302 = scmp.eq.s32.totalorder %s301, 0
          %p303 = pneg %p302
          // Predicated region
          $region86: #{tpu_custom_call.1} parent=73 // pred_check
            _
          $region87: #{tpu_custom_call.1} parent=73 // pred_check_branch
            %305 = sbr.rel (%p302) target = $region89
          $region88: #{tpu_custom_call.1} parent=73 // pred_region
            %s306 = sand.u32 1, 7
            %s307 = ssub.s32 1, %s306
            %s308 = scalar_lea.vmem %s279, %s307
            %s309 = ssub.s32 1, %s306
            %s310 = scalar_lea.vmem %s280, %s309 [#allocation2]
            %s311 = sshll.u32 1, %s306
            %s312 = ssub.s32 %s311, 1
            loop: start=0, step=1, limit=1
            $region90: #{tpu_custom_call.1} parent=88 // loop_pre_header
              _
            $region91: #{tpu_custom_call.1} parent=88 // loop_header
              %s314 = sphi 0, %s318
              %p315 = scmp.ge.s32.totalorder %s314, 1
              %s319 = sphi %s308, %s308
              %s320 = sphi %s310, %s310
            $region92: #{tpu_custom_call.1} parent=88 // loop_header_branch
              %317 = sbr.rel (%p315) target = $region96
            $region93: #{tpu_custom_call.1} parent=88 // loop_body
              %v321 = vld [vmem:[%s319] sm:%s312]
              %322 = vst [vmem:[%s320] sm:%s312] %v321
            $region94: #{tpu_custom_call.1} parent=88 // loop_footer
              %s318 = sadd.s32 1, %s314
            $region95: #{tpu_custom_call.1} parent=88 // loop_footer_branch
              %313 = sbr.rel target = $region91
            $region96: #{tpu_custom_call.1} parent=88 // loop_exit
              _
          $region89: #{tpu_custom_call.1} parent=73 // pred_fallthru
            _
        $region74: #{tpu_custom_call.1} parent=39 // pred_fallthru
          _
        // Predicated region
        $region75: #{tpu_custom_call.1} parent=39 // pred_check
          %p286 = pneg %p282
        $region76: #{tpu_custom_call.1} parent=39 // pred_check_branch
          %288 = sbr.rel (%p286) target = $region78
        $region77: #{tpu_custom_call.1} parent=39 // pred_region
          %s289 = sshll.u32 1, 1
          %s290 = ssub.s32 %s289, 1
          loop: start=0, step=1, limit=1
          $region79: #{tpu_custom_call.1} parent=77 // loop_pre_header
            _
          $region80: #{tpu_custom_call.1} parent=77 // loop_header
            %s292 = sphi 0, %s296
            %p293 = scmp.ge.s32.totalorder %s292, 1
            %s297 = sphi %s279, %s279
            %s298 = sphi %s280, %s280
          $region81: #{tpu_custom_call.1} parent=77 // loop_header_branch
            %295 = sbr.rel (%p293) target = $region85
          $region82: #{tpu_custom_call.1} parent=77 // loop_body
            %v299 = vld [vmem:[%s297] sm:%s290]
            %300 = vst [vmem:[%s298] sm:%s290] %v299
          $region83: #{tpu_custom_call.1} parent=77 // loop_footer
            %s296 = sadd.s32 1, %s292
          $region84: #{tpu_custom_call.1} parent=77 // loop_footer_branch
            %291 = sbr.rel target = $region80
          $region85: #{tpu_custom_call.1} parent=77 // loop_exit
            _
        $region78: #{tpu_custom_call.1} parent=39 // pred_fallthru
          _
        // Predicated region
        $region97: #{tpu_custom_call.1} parent=39 // pred_check
          _
        $region98: #{tpu_custom_call.1} parent=39 // pred_check_branch
          %325 = sbr.rel (0) target = $region100
        $region99: #{tpu_custom_call.1} parent=39 // pred_region
          %326 = vsyncadd [#allocation3], 16
        $region100: #{tpu_custom_call.1} parent=39 // pred_fallthru
          _
        %s327 = sadd.s32 %s228, 2
        %s328 = sld [smem:[#allocation5 + %s327]]
        %s329 = scalar_lea.vmem %s2, %s328
        %s330 = scalar_lea.vmem [#allocation2], 2
        %p332 = scmp.lt.u32.totalorder 1, 8
        %p333 = pneg %p332
        // Predicated region
        $region101: #{tpu_custom_call.1} parent=39 // pred_check
          _
        $region102: #{tpu_custom_call.1} parent=39 // pred_check_branch
          %335 = sbr.rel (%p332) target = $region104
        $region103: #{tpu_custom_call.1} parent=39 // pred_region
          %s351 = sand.u32 1, 7
          %p352 = scmp.eq.s32.totalorder %s351, 0
          %p353 = pneg %p352
          // Predicated region
          $region116: #{tpu_custom_call.1} parent=103 // pred_check
            _
          $region117: #{tpu_custom_call.1} parent=103 // pred_check_branch
            %355 = sbr.rel (%p352) target = $region119
          $region118: #{tpu_custom_call.1} parent=103 // pred_region
            %s356 = sand.u32 1, 7
            %s357 = ssub.s32 1, %s356
            %s358 = scalar_lea.vmem %s329, %s357
            %s359 = ssub.s32 1, %s356
            %s360 = scalar_lea.vmem %s330, %s359 [#allocation2]
            %s361 = sshll.u32 1, %s356
            %s362 = ssub.s32 %s361, 1
            loop: start=0, step=1, limit=1
            $region120: #{tpu_custom_call.1} parent=118 // loop_pre_header
              _
            $region121: #{tpu_custom_call.1} parent=118 // loop_header
              %s364 = sphi 0, %s368
              %p365 = scmp.ge.s32.totalorder %s364, 1
              %s369 = sphi %s358, %s358
              %s370 = sphi %s360, %s360
            $region122: #{tpu_custom_call.1} parent=118 // loop_header_branch
              %367 = sbr.rel (%p365) target = $region126
            $region123: #{tpu_custom_call.1} parent=118 // loop_body
              %v371 = vld [vmem:[%s369] sm:%s362]
              %372 = vst [vmem:[%s370] sm:%s362] %v371
            $region124: #{tpu_custom_call.1} parent=118 // loop_footer
              %s368 = sadd.s32 1, %s364
            $region125: #{tpu_custom_call.1} parent=118 // loop_footer_branch
              %363 = sbr.rel target = $region121
            $region126: #{tpu_custom_call.1} parent=118 // loop_exit
              _
          $region119: #{tpu_custom_call.1} parent=103 // pred_fallthru
            _
        $region104: #{tpu_custom_call.1} parent=39 // pred_fallthru
          _
        // Predicated region
        $region105: #{tpu_custom_call.1} parent=39 // pred_check
          %p336 = pneg %p332
        $region106: #{tpu_custom_call.1} parent=39 // pred_check_branch
          %338 = sbr.rel (%p336) target = $region108
        $region107: #{tpu_custom_call.1} parent=39 // pred_region
          %s339 = sshll.u32 1, 1
          %s340 = ssub.s32 %s339, 1
          loop: start=0, step=1, limit=1
          $region109: #{tpu_custom_call.1} parent=107 // loop_pre_header
            _
          $region110: #{tpu_custom_call.1} parent=107 // loop_header
            %s342 = sphi 0, %s346
            %p343 = scmp.ge.s32.totalorder %s342, 1
            %s347 = sphi %s329, %s329
            %s348 = sphi %s330, %s330
          $region111: #{tpu_custom_call.1} parent=107 // loop_header_branch
            %345 = sbr.rel (%p343) target = $region115
          $region112: #{tpu_custom_call.1} parent=107 // loop_body
            %v349 = vld [vmem:[%s347] sm:%s340]
            %350 = vst [vmem:[%s348] sm:%s340] %v349
          $region113: #{tpu_custom_call.1} parent=107 // loop_footer
            %s346 = sadd.s32 1, %s342
          $region114: #{tpu_custom_call.1} parent=107 // loop_footer_branch
            %341 = sbr.rel target = $region110
          $region115: #{tpu_custom_call.1} parent=107 // loop_exit
            _
        $region108: #{tpu_custom_call.1} parent=39 // pred_fallthru
          _
        // Predicated region
        $region127: #{tpu_custom_call.1} parent=39 // pred_check
          _
        $region128: #{tpu_custom_call.1} parent=39 // pred_check_branch
          %375 = sbr.rel (0) target = $region130
        $region129: #{tpu_custom_call.1} parent=39 // pred_region
          %376 = vsyncadd [#allocation3], 16
        $region130: #{tpu_custom_call.1} parent=39 // pred_fallthru
          _
        %s377 = sadd.s32 %s228, 3
        %s378 = sld [smem:[#allocation5 + %s377]]
        %s379 = scalar_lea.vmem %s2, %s378
        %s380 = scalar_lea.vmem [#allocation2], 3
        %p382 = scmp.lt.u32.totalorder 1, 8
        %p383 = pneg %p382
        // Predicated region
        $region131: #{tpu_custom_call.1} parent=39 // pred_check
          _
        $region132: #{tpu_custom_call.1} parent=39 // pred_check_branch
          %385 = sbr.rel (%p382) target = $region134
        $region133: #{tpu_custom_call.1} parent=39 // pred_region
          %s401 = sand.u32 1, 7
          %p402 = scmp.eq.s32.totalorder %s401, 0
          %p403 = pneg %p402
          // Predicated region
          $region146: #{tpu_custom_call.1} parent=133 // pred_check
            _
          $region147: #{tpu_custom_call.1} parent=133 // pred_check_branch
            %405 = sbr.rel (%p402) target = $region149
          $region148: #{tpu_custom_call.1} parent=133 // pred_region
            %s406 = sand.u32 1, 7
            %s407 = ssub.s32 1, %s406
            %s408 = scalar_lea.vmem %s379, %s407
            %s409 = ssub.s32 1, %s406
            %s410 = scalar_lea.vmem %s380, %s409 [#allocation2]
            %s411 = sshll.u32 1, %s406
            %s412 = ssub.s32 %s411, 1
            loop: start=0, step=1, limit=1
            $region150: #{tpu_custom_call.1} parent=148 // loop_pre_header
              _
            $region151: #{tpu_custom_call.1} parent=148 // loop_header
              %s414 = sphi 0, %s418
              %p415 = scmp.ge.s32.totalorder %s414, 1
              %s419 = sphi %s408, %s408
              %s420 = sphi %s410, %s410
            $region152: #{tpu_custom_call.1} parent=148 // loop_header_branch
              %417 = sbr.rel (%p415) target = $region156
            $region153: #{tpu_custom_call.1} parent=148 // loop_body
              %v421 = vld [vmem:[%s419] sm:%s412]
              %422 = vst [vmem:[%s420] sm:%s412] %v421
            $region154: #{tpu_custom_call.1} parent=148 // loop_footer
              %s418 = sadd.s32 1, %s414
            $region155: #{tpu_custom_call.1} parent=148 // loop_footer_branch
              %413 = sbr.rel target = $region151
            $region156: #{tpu_custom_call.1} parent=148 // loop_exit
              _
          $region149: #{tpu_custom_call.1} parent=133 // pred_fallthru
            _
        $region134: #{tpu_custom_call.1} parent=39 // pred_fallthru
          _
        // Predicated region
        $region135: #{tpu_custom_call.1} parent=39 // pred_check
          %p386 = pneg %p382
        $region136: #{tpu_custom_call.1} parent=39 // pred_check_branch
          %388 = sbr.rel (%p386) target = $region138
        $region137: #{tpu_custom_call.1} parent=39 // pred_region
          %s389 = sshll.u32 1, 1
          %s390 = ssub.s32 %s389, 1
          loop: start=0, step=1, limit=1
          $region139: #{tpu_custom_call.1} parent=137 // loop_pre_header
            _
          $region140: #{tpu_custom_call.1} parent=137 // loop_header
            %s392 = sphi 0, %s396
            %p393 = scmp.ge.s32.totalorder %s392, 1
            %s397 = sphi %s379, %s379
            %s398 = sphi %s380, %s380
          $region141: #{tpu_custom_call.1} parent=137 // loop_header_branch
            %395 = sbr.rel (%p393) target = $region145
          $region142: #{tpu_custom_call.1} parent=137 // loop_body
            %v399 = vld [vmem:[%s397] sm:%s390]
            %400 = vst [vmem:[%s398] sm:%s390] %v399
          $region143: #{tpu_custom_call.1} parent=137 // loop_footer
            %s396 = sadd.s32 1, %s392
          $region144: #{tpu_custom_call.1} parent=137 // loop_footer_branch
            %391 = sbr.rel target = $region140
          $region145: #{tpu_custom_call.1} parent=137 // loop_exit
            _
        $region138: #{tpu_custom_call.1} parent=39 // pred_fallthru
          _
        // Predicated region
        $region157: #{tpu_custom_call.1} parent=39 // pred_check
          _
        $region158: #{tpu_custom_call.1} parent=39 // pred_check_branch
          %425 = sbr.rel (0) target = $region160
        $region159: #{tpu_custom_call.1} parent=39 // pred_region
          %426 = vsyncadd [#allocation3], 16
        $region160: #{tpu_custom_call.1} parent=39 // pred_fallthru
          _
        %s427 = sadd.s32 %s228, 4
        %s428 = sld [smem:[#allocation5 + %s427]]
        %s429 = scalar_lea.vmem %s2, %s428
        %s430 = scalar_lea.vmem [#allocation2], 4
        %p432 = scmp.lt.u32.totalorder 1, 8
        %p433 = pneg %p432
        // Predicated region
        $region161: #{tpu_custom_call.1} parent=39 // pred_check
          _
        $region162: #{tpu_custom_call.1} parent=39 // pred_check_branch
          %435 = sbr.rel (%p432) target = $region164
        $region163: #{tpu_custom_call.1} parent=39 // pred_region
          %s451 = sand.u32 1, 7
          %p452 = scmp.eq.s32.totalorder %s451, 0
          %p453 = pneg %p452
          // Predicated region
          $region176: #{tpu_custom_call.1} parent=163 // pred_check
            _
          $region177: #{tpu_custom_call.1} parent=163 // pred_check_branch
            %455 = sbr.rel (%p452) target = $region179
          $region178: #{tpu_custom_call.1} parent=163 // pred_region
            %s456 = sand.u32 1, 7
            %s457 = ssub.s32 1, %s456
            %s458 = scalar_lea.vmem %s429, %s457
            %s459 = ssub.s32 1, %s456
            %s460 = scalar_lea.vmem %s430, %s459 [#allocation2]
            %s461 = sshll.u32 1, %s456
            %s462 = ssub.s32 %s461, 1
            loop: start=0, step=1, limit=1
            $region180: #{tpu_custom_call.1} parent=178 // loop_pre_header
              _
            $region181: #{tpu_custom_call.1} parent=178 // loop_header
              %s464 = sphi 0, %s468
              %p465 = scmp.ge.s32.totalorder %s464, 1
              %s469 = sphi %s458, %s458
              %s470 = sphi %s460, %s460
            $region182: #{tpu_custom_call.1} parent=178 // loop_header_branch
              %467 = sbr.rel (%p465) target = $region186
            $region183: #{tpu_custom_call.1} parent=178 // loop_body
              %v471 = vld [vmem:[%s469] sm:%s462]
              %472 = vst [vmem:[%s470] sm:%s462] %v471
            $region184: #{tpu_custom_call.1} parent=178 // loop_footer
              %s468 = sadd.s32 1, %s464
            $region185: #{tpu_custom_call.1} parent=178 // loop_footer_branch
              %463 = sbr.rel target = $region181
            $region186: #{tpu_custom_call.1} parent=178 // loop_exit
              _
          $region179: #{tpu_custom_call.1} parent=163 // pred_fallthru
            _
        $region164: #{tpu_custom_call.1} parent=39 // pred_fallthru
          _
        // Predicated region
        $region165: #{tpu_custom_call.1} parent=39 // pred_check
          %p436 = pneg %p432
        $region166: #{tpu_custom_call.1} parent=39 // pred_check_branch
          %438 = sbr.rel (%p436) target = $region168
        $region167: #{tpu_custom_call.1} parent=39 // pred_region
          %s439 = sshll.u32 1, 1
          %s440 = ssub.s32 %s439, 1
          loop: start=0, step=1, limit=1
          $region169: #{tpu_custom_call.1} parent=167 // loop_pre_header
            _
          $region170: #{tpu_custom_call.1} parent=167 // loop_header
            %s442 = sphi 0, %s446
            %p443 = scmp.ge.s32.totalorder %s442, 1
            %s447 = sphi %s429, %s429
            %s448 = sphi %s430, %s430
          $region171: #{tpu_custom_call.1} parent=167 // loop_header_branch
            %445 = sbr.rel (%p443) target = $region175
          $region172: #{tpu_custom_call.1} parent=167 // loop_body
            %v449 = vld [vmem:[%s447] sm:%s440]
            %450 = vst [vmem:[%s448] sm:%s440] %v449
          $region173: #{tpu_custom_call.1} parent=167 // loop_footer
            %s446 = sadd.s32 1, %s442
          $region174: #{tpu_custom_call.1} parent=167 // loop_footer_branch
            %441 = sbr.rel target = $region170
          $region175: #{tpu_custom_call.1} parent=167 // loop_exit
            _
        $region168: #{tpu_custom_call.1} parent=39 // pred_fallthru
          _
        // Predicated region
        $region187: #{tpu_custom_call.1} parent=39 // pred_check
          _
        $region188: #{tpu_custom_call.1} parent=39 // pred_check_branch
          %475 = sbr.rel (0) target = $region190
        $region189: #{tpu_custom_call.1} parent=39 // pred_region
          %476 = vsyncadd [#allocation3], 16
        $region190: #{tpu_custom_call.1} parent=39 // pred_fallthru
          _
        %s477 = sadd.s32 %s228, 5
        %s478 = sld [smem:[#allocation5 + %s477]]
        %s479 = scalar_lea.vmem %s2, %s478
        %s480 = scalar_lea.vmem [#allocation2], 5
        %p482 = scmp.lt.u32.totalorder 1, 8
        %p483 = pneg %p482
        // Predicated region
        $region191: #{tpu_custom_call.1} parent=39 // pred_check
          _
        $region192: #{tpu_custom_call.1} parent=39 // pred_check_branch
          %485 = sbr.rel (%p482) target = $region194
        $region193: #{tpu_custom_call.1} parent=39 // pred_region
          %s501 = sand.u32 1, 7
          %p502 = scmp.eq.s32.totalorder %s501, 0
          %p503 = pneg %p502
          // Predicated region
          $region206: #{tpu_custom_call.1} parent=193 // pred_check
            _
          $region207: #{tpu_custom_call.1} parent=193 // pred_check_branch
            %505 = sbr.rel (%p502) target = $region209
          $region208: #{tpu_custom_call.1} parent=193 // pred_region
            %s506 = sand.u32 1, 7
            %s507 = ssub.s32 1, %s506
            %s508 = scalar_lea.vmem %s479, %s507
            %s509 = ssub.s32 1, %s506
            %s510 = scalar_lea.vmem %s480, %s509 [#allocation2]
            %s511 = sshll.u32 1, %s506
            %s512 = ssub.s32 %s511, 1
            loop: start=0, step=1, limit=1
            $region210: #{tpu_custom_call.1} parent=208 // loop_pre_header
              _
            $region211: #{tpu_custom_call.1} parent=208 // loop_header
              %s514 = sphi 0, %s518
              %p515 = scmp.ge.s32.totalorder %s514, 1
              %s519 = sphi %s508, %s508
              %s520 = sphi %s510, %s510
            $region212: #{tpu_custom_call.1} parent=208 // loop_header_branch
              %517 = sbr.rel (%p515) target = $region216
            $region213: #{tpu_custom_call.1} parent=208 // loop_body
              %v521 = vld [vmem:[%s519] sm:%s512]
              %522 = vst [vmem:[%s520] sm:%s512] %v521
            $region214: #{tpu_custom_call.1} parent=208 // loop_footer
              %s518 = sadd.s32 1, %s514
            $region215: #{tpu_custom_call.1} parent=208 // loop_footer_branch
              %513 = sbr.rel target = $region211
            $region216: #{tpu_custom_call.1} parent=208 // loop_exit
              _
          $region209: #{tpu_custom_call.1} parent=193 // pred_fallthru
            _
        $region194: #{tpu_custom_call.1} parent=39 // pred_fallthru
          _
        // Predicated region
        $region195: #{tpu_custom_call.1} parent=39 // pred_check
          %p486 = pneg %p482
        $region196: #{tpu_custom_call.1} parent=39 // pred_check_branch
          %488 = sbr.rel (%p486) target = $region198
        $region197: #{tpu_custom_call.1} parent=39 // pred_region
          %s489 = sshll.u32 1, 1
          %s490 = ssub.s32 %s489, 1
          loop: start=0, step=1, limit=1
          $region199: #{tpu_custom_call.1} parent=197 // loop_pre_header
            _
          $region200: #{tpu_custom_call.1} parent=197 // loop_header
            %s492 = sphi 0, %s496
            %p493 = scmp.ge.s32.totalorder %s492, 1
            %s497 = sphi %s479, %s479
            %s498 = sphi %s480, %s480
          $region201: #{tpu_custom_call.1} parent=197 // loop_header_branch
            %495 = sbr.rel (%p493) target = $region205
          $region202: #{tpu_custom_call.1} parent=197 // loop_body
            %v499 = vld [vmem:[%s497] sm:%s490]
            %500 = vst [vmem:[%s498] sm:%s490] %v499
          $region203: #{tpu_custom_call.1} parent=197 // loop_footer
            %s496 = sadd.s32 1, %s492
          $region204: #{tpu_custom_call.1} parent=197 // loop_footer_branch
            %491 = sbr.rel target = $region200
          $region205: #{tpu_custom_call.1} parent=197 // loop_exit
            _
        $region198: #{tpu_custom_call.1} parent=39 // pred_fallthru
          _
        // Predicated region
        $region217: #{tpu_custom_call.1} parent=39 // pred_check
          _
        $region218: #{tpu_custom_call.1} parent=39 // pred_check_branch
          %525 = sbr.rel (0) target = $region220
        $region219: #{tpu_custom_call.1} parent=39 // pred_region
          %526 = vsyncadd [#allocation3], 16
        $region220: #{tpu_custom_call.1} parent=39 // pred_fallthru
          _
        %s527 = sadd.s32 %s228, 6
        %s528 = sld [smem:[#allocation5 + %s527]]
        %s529 = scalar_lea.vmem %s2, %s528
        %s530 = scalar_lea.vmem [#allocation2], 6
        %p532 = scmp.lt.u32.totalorder 1, 8
        %p533 = pneg %p532
        // Predicated region
        $region221: #{tpu_custom_call.1} parent=39 // pred_check
          _
        $region222: #{tpu_custom_call.1} parent=39 // pred_check_branch
          %535 = sbr.rel (%p532) target = $region224
        $region223: #{tpu_custom_call.1} parent=39 // pred_region
          %s551 = sand.u32 1, 7
          %p552 = scmp.eq.s32.totalorder %s551, 0
          %p553 = pneg %p552
          // Predicated region
          $region236: #{tpu_custom_call.1} parent=223 // pred_check
            _
          $region237: #{tpu_custom_call.1} parent=223 // pred_check_branch
            %555 = sbr.rel (%p552) target = $region239
          $region238: #{tpu_custom_call.1} parent=223 // pred_region
            %s556 = sand.u32 1, 7
            %s557 = ssub.s32 1, %s556
            %s558 = scalar_lea.vmem %s529, %s557
            %s559 = ssub.s32 1, %s556
            %s560 = scalar_lea.vmem %s530, %s559 [#allocation2]
            %s561 = sshll.u32 1, %s556
            %s562 = ssub.s32 %s561, 1
            loop: start=0, step=1, limit=1
            $region240: #{tpu_custom_call.1} parent=238 // loop_pre_header
              _
            $region241: #{tpu_custom_call.1} parent=238 // loop_header
              %s564 = sphi 0, %s568
              %p565 = scmp.ge.s32.totalorder %s564, 1
              %s569 = sphi %s558, %s558
              %s570 = sphi %s560, %s560
            $region242: #{tpu_custom_call.1} parent=238 // loop_header_branch
              %567 = sbr.rel (%p565) target = $region246
            $region243: #{tpu_custom_call.1} parent=238 // loop_body
              %v571 = vld [vmem:[%s569] sm:%s562]
              %572 = vst [vmem:[%s570] sm:%s562] %v571
            $region244: #{tpu_custom_call.1} parent=238 // loop_footer
              %s568 = sadd.s32 1, %s564
            $region245: #{tpu_custom_call.1} parent=238 // loop_footer_branch
              %563 = sbr.rel target = $region241
            $region246: #{tpu_custom_call.1} parent=238 // loop_exit
              _
          $region239: #{tpu_custom_call.1} parent=223 // pred_fallthru
            _
        $region224: #{tpu_custom_call.1} parent=39 // pred_fallthru
          _
        // Predicated region
        $region225: #{tpu_custom_call.1} parent=39 // pred_check
          %p536 = pneg %p532
        $region226: #{tpu_custom_call.1} parent=39 // pred_check_branch
          %538 = sbr.rel (%p536) target = $region228
        $region227: #{tpu_custom_call.1} parent=39 // pred_region
          %s539 = sshll.u32 1, 1
          %s540 = ssub.s32 %s539, 1
          loop: start=0, step=1, limit=1
          $region229: #{tpu_custom_call.1} parent=227 // loop_pre_header
            _
          $region230: #{tpu_custom_call.1} parent=227 // loop_header
            %s542 = sphi 0, %s546
            %p543 = scmp.ge.s32.totalorder %s542, 1
            %s547 = sphi %s529, %s529
            %s548 = sphi %s530, %s530
          $region231: #{tpu_custom_call.1} parent=227 // loop_header_branch
            %545 = sbr.rel (%p543) target = $region235
          $region232: #{tpu_custom_call.1} parent=227 // loop_body
            %v549 = vld [vmem:[%s547] sm:%s540]
            %550 = vst [vmem:[%s548] sm:%s540] %v549
          $region233: #{tpu_custom_call.1} parent=227 // loop_footer
            %s546 = sadd.s32 1, %s542
          $region234: #{tpu_custom_call.1} parent=227 // loop_footer_branch
            %541 = sbr.rel target = $region230
          $region235: #{tpu_custom_call.1} parent=227 // loop_exit
            _
        $region228: #{tpu_custom_call.1} parent=39 // pred_fallthru
          _
        // Predicated region
        $region247: #{tpu_custom_call.1} parent=39 // pred_check
          _
        $region248: #{tpu_custom_call.1} parent=39 // pred_check_branch
          %575 = sbr.rel (0) target = $region250
        $region249: #{tpu_custom_call.1} parent=39 // pred_region
          %576 = vsyncadd [#allocation3], 16
        $region250: #{tpu_custom_call.1} parent=39 // pred_fallthru
          _
        %s577 = sadd.s32 %s228, 7
        %s578 = sld [smem:[#allocation5 + %s577]]
        %s579 = scalar_lea.vmem %s2, %s578
        %s580 = scalar_lea.vmem [#allocation2], 7
        %p582 = scmp.lt.u32.totalorder 1, 8
        %p583 = pneg %p582
        // Predicated region
        $region251: #{tpu_custom_call.1} parent=39 // pred_check
          _
        $region252: #{tpu_custom_call.1} parent=39 // pred_check_branch
          %585 = sbr.rel (%p582) target = $region254
        $region253: #{tpu_custom_call.1} parent=39 // pred_region
          %s601 = sand.u32 1, 7
          %p602 = scmp.eq.s32.totalorder %s601, 0
          %p603 = pneg %p602
          // Predicated region
          $region266: #{tpu_custom_call.1} parent=253 // pred_check
            _
          $region267: #{tpu_custom_call.1} parent=253 // pred_check_branch
            %605 = sbr.rel (%p602) target = $region269
          $region268: #{tpu_custom_call.1} parent=253 // pred_region
            %s606 = sand.u32 1, 7
            %s607 = ssub.s32 1, %s606
            %s608 = scalar_lea.vmem %s579, %s607
            %s609 = ssub.s32 1, %s606
            %s610 = scalar_lea.vmem %s580, %s609 [#allocation2]
            %s611 = sshll.u32 1, %s606
            %s612 = ssub.s32 %s611, 1
            loop: start=0, step=1, limit=1
            $region270: #{tpu_custom_call.1} parent=268 // loop_pre_header
              _
            $region271: #{tpu_custom_call.1} parent=268 // loop_header
              %s614 = sphi 0, %s618
              %p615 = scmp.ge.s32.totalorder %s614, 1
              %s619 = sphi %s608, %s608
              %s620 = sphi %s610, %s610
            $region272: #{tpu_custom_call.1} parent=268 // loop_header_branch
              %617 = sbr.rel (%p615) target = $region276
            $region273: #{tpu_custom_call.1} parent=268 // loop_body
              %v621 = vld [vmem:[%s619] sm:%s612]
              %622 = vst [vmem:[%s620] sm:%s612] %v621
            $region274: #{tpu_custom_call.1} parent=268 // loop_footer
              %s618 = sadd.s32 1, %s614
            $region275: #{tpu_custom_call.1} parent=268 // loop_footer_branch
              %613 = sbr.rel target = $region271
            $region276: #{tpu_custom_call.1} parent=268 // loop_exit
              _
          $region269: #{tpu_custom_call.1} parent=253 // pred_fallthru
            _
        $region254: #{tpu_custom_call.1} parent=39 // pred_fallthru
          _
        // Predicated region
        $region255: #{tpu_custom_call.1} parent=39 // pred_check
          %p586 = pneg %p582
        $region256: #{tpu_custom_call.1} parent=39 // pred_check_branch
          %588 = sbr.rel (%p586) target = $region258
        $region257: #{tpu_custom_call.1} parent=39 // pred_region
          %s589 = sshll.u32 1, 1
          %s590 = ssub.s32 %s589, 1
          loop: start=0, step=1, limit=1
          $region259: #{tpu_custom_call.1} parent=257 // loop_pre_header
            _
          $region260: #{tpu_custom_call.1} parent=257 // loop_header
            %s592 = sphi 0, %s596
            %p593 = scmp.ge.s32.totalorder %s592, 1
            %s597 = sphi %s579, %s579
            %s598 = sphi %s580, %s580
          $region261: #{tpu_custom_call.1} parent=257 // loop_header_branch
            %595 = sbr.rel (%p593) target = $region265
          $region262: #{tpu_custom_call.1} parent=257 // loop_body
            %v599 = vld [vmem:[%s597] sm:%s590]
            %600 = vst [vmem:[%s598] sm:%s590] %v599
          $region263: #{tpu_custom_call.1} parent=257 // loop_footer
            %s596 = sadd.s32 1, %s592
          $region264: #{tpu_custom_call.1} parent=257 // loop_footer_branch
            %591 = sbr.rel target = $region260
          $region265: #{tpu_custom_call.1} parent=257 // loop_exit
            _
        $region258: #{tpu_custom_call.1} parent=39 // pred_fallthru
          _
        // Predicated region
        $region277: #{tpu_custom_call.1} parent=39 // pred_check
          _
        $region278: #{tpu_custom_call.1} parent=39 // pred_check_branch
          %625 = sbr.rel (0) target = $region280
        $region279: #{tpu_custom_call.1} parent=39 // pred_region
          %626 = vsyncadd [#allocation3], 16
        $region280: #{tpu_custom_call.1} parent=39 // pred_fallthru
          _
        %v627 = vld [vmem:[%s227] sm:$0xff]
        %v628 = vld [vmem:[%s4] sm:$0x1]
        %v629 = vld [vmem:[%s4 + $0x1] sm:$0x1]
        %v630 = vlaneseq
        %v631 = vshrl.u32 %v630, 7
        %v632 = vsub.s32 0, %v631
        %v633 = vrot.slane %v628, %v632
        %vm634 = vcmp.eq.s32.totalorder %v627, 1
        %v635 = vsel %vm634, 1, 0
        %636 = vset.pattern.permute.xlu0 0
        %637 = vperm.xlu0 %636, %v635
        %v638 = vpop.permute.xlu0 %637
        %vm639 = vcmp.eq.s32.totalorder %v638, 1
        %v640 = vlaneseq
        %v641 = vshrl.u32 %v640, 7
        %v642 = vsub.s32 0, %v641
        %v643 = vrot.slane %v629, %v642
        %v644 = vsel %vm639, %v643, %v633
        %v645 = vld [vmem:[%s3] sm:$0xff]
        %v646 = vadd.f32 %v645, %v644
        %s647 = smul.u32 8, 1
        %s648 = sshll.u32 %s647, 4
        %649 = dma.done [#allocation3], %s648
        %v650 = vld [vmem:[#allocation2] sm:$0xff]
        %v651 = vadd.f32 %v650, %v646
        %vm652 = vcmask 261120
        %v653 = vsel %vm652, %v651, 0.0
        %654 = vadd.xlane.f32.xlu0 %v653
        %v655 = vpop.xlane.xlu0 %654
        %v656 = vrcp.pop 32.0
        %v657 = vmul.f32 %v655, %v656
        %v658 = vsub.f32 %v651, %v657
        %v659 = vmul.f32 %v658, %v658
        %v660 = vsel %vm652, %v659, 0.0
        %661 = vadd.xlane.f32.xlu0 %v660
        %v662 = vpop.xlane.xlu0 %661
        %v663 = vmul.f32 %v662, %v656
        %v664 = vadd.f32 %v663, 1e-12
        %v665 = vrsqrt.pop %v664
        %v666 = vmul.f32 %v658, %v665
        %v667 = vld [vmem:[%s5] sm:$0x1]
        %v669 = vlaneseq
        %v670 = vshrl.u32 %v669, 7
        %v671 = vsub.s32 0, %v670
        %v672 = vrot.slane %v667, %v671
        %v674 = vmul.f32 %v666, %v672
        %v675 = vld [vmem:[%s6] sm:$0x1]
        %v677 = vlaneseq
        %v678 = vshrl.u32 %v677, 7
        %v679 = vsub.s32 0, %v678
        %v680 = vrot.slane %v675, %v679
        %v682 = vadd.f32 %v674, %v680
        %683 = vst.msk [vmem:[%s223] sm:$0xff] %vm652, %v682
        %s684 = sand.u32 %s145, 1
        %s685 = scalar_lea.sflag [#allocation7], %s684
        %s686 = sand.u32 %s145, 1
        %s687 = smul.addr %s686, 8
        %s688 = scalar_lea.vmem [#allocation6], %s687
        // Predicated region
        $region281: #{tpu_custom_call.1} parent=39 // pred_check
          %p689 = pneg %p155
        $region282: #{tpu_custom_call.1} parent=39 // pred_check_branch
          %691 = sbr.rel (%p689) target = $region284
        $region283: #{tpu_custom_call.1} parent=39 // pred_region
          %s693 = ssub.s32 128, 128
          %694 = vsyncadd %s685, %s693
          %s695 = smul.addr %s27, 128
          %s696 = scalar_lea.hbm %s7, %s695
          %s698 = sshll.u32 %s688, 4
          %s699 = int_to_ptr.vmem [resolvable:$true] %s698
          %701 = dma.vmem_to_hbm [thread:$0]  %s699, 128, %s696, %s685
        $region284: #{tpu_custom_call.1} parent=39 // pred_fallthru
          _
      $region40: #{tpu_custom_call.1} parent=5 // pred_fallthru
        _
      %p702 = scmp.le.s32.totalorder 2, %s22
      // Predicated region
      $region285: #{tpu_custom_call.1} parent=5 // pred_check
        %p703 = pneg %p702
      $region286: #{tpu_custom_call.1} parent=5 // pred_check_branch
        %705 = sbr.rel (%p703) target = $region288
      $region287: #{tpu_custom_call.1} parent=5 // pred_region
        %s706 = ssub.s32 %s22, 2
        // Predicated region
        $region289: #{tpu_custom_call.1} parent=287 // pred_check
          %p707 = pneg %p161
        $region290: #{tpu_custom_call.1} parent=287 // pred_check_branch
          %709 = sbr.rel (%p707) target = $region292
        $region291: #{tpu_custom_call.1} parent=287 // pred_region
          %s710 = sand.u32 %s146, 1
          %s711 = scalar_lea.sflag [#allocation7], %s710
          %s712 = sand.u32 %s146, 1
          %s713 = smul.addr %s712, 8
          %s714 = scalar_lea.vmem [#allocation6], %s713
          %715 = dma.done %s711, 128
        $region292: #{tpu_custom_call.1} parent=287 // pred_fallthru
          _
      $region288: #{tpu_custom_call.1} parent=5 // pred_fallthru
        _
    $region6: #{tpu_custom_call.1} parent=1 // loop_footer
      %s26 = sadd.s32 1, %s22
    $region7: #{tpu_custom_call.1} parent=1 // loop_footer_branch
      %21 = sbr.rel target = $region3
    $region8: #{tpu_custom_call.1} parent=1 // loop_exit
      _
    %716 = vsyncpa [#allocation7], 1
    %s717 = scalar_lea.sflag [#allocation7], 1
    %718 = vsyncpa %s717, 1
  %719 = vsyncmov [#allocation3]
  %s720 = vpop.sfrf %719
  %p721 = scmp.eq.s32.totalorder %s720, 0
  %p722 = pneg %p721
  %724 = shalt.err (%p722)
  %s725 = scalar_lea.sflag [#allocation3], 1
  %726 = vsyncmov %s725
  %s727 = vpop.sfrf %726
  %p728 = scmp.eq.s32.totalorder %s727, 0
  %p729 = pneg %p728
  %731 = shalt.err (%p729)

</llo_original>
